<compile_context>
chip_gen: v5e
topology: v5e:2x2
jax: 0.10.0
libtpu: 0.0.40
codegen_flags: <defaults>
</compile_context>

<pallas_src>
import functools
import math

import jax
import jax.numpy as jnp
from jax.experimental import pallas as pl
from jax.experimental.pallas import tpu as pltpu


def _freq_tables(num_freqs: int, logscale: bool, scale: float, d: int):
    """Per-column (frequency*scale) and cos-mask row vectors, torch column order.

    Trig columns (after the leading D passthrough columns) are ordered
    [sin(f0 x s) (D cols), cos(f0 x s) (D cols), sin(f1 x s), cos(f1 x s), ...]
    exactly matching torch.cat(out, dim=-1) in the reference module.
    """
    max_freq = num_freqs - 1
    if logscale:
        freqs = 2.0 ** jnp.linspace(0.0, float(max_freq), num_freqs)
    else:
        freqs = jnp.linspace(1.0, 2.0 ** max_freq, num_freqs)
    freqs = freqs.astype(jnp.float32) * jnp.float32(scale)        # (F,)
    fs_cols = jnp.repeat(freqs, 2 * d).reshape(1, -1)             # (1, 2*F*D)
    group = jnp.concatenate(
        [jnp.zeros((d,), jnp.float32), jnp.ones((d,), jnp.float32)])  # sin=0, cos=1
    cos_mask = jnp.tile(group, (num_freqs,)).reshape(1, -1)       # (1, 2*F*D)
    return fs_cols, cos_mask


def _fourier_kernel(x_ref, fs_ref, mask_ref, o_ref, *, d, n_rep):
    # x_ref: (tb, D); fs_ref/mask_ref: (1, 2F*D); o_ref: (tb, D*(2F+1)).
    x = x_ref[...]
    xf = x.astype(jnp.float32)
    x_rep = jnp.tile(xf, (1, n_rep))          # (tb, 2F*D)
    angles = x_rep * fs_ref[...]              # single broadcast of (1, W) constants
    trig = jnp.where(mask_ref[...] > 0.5, jnp.cos(angles), jnp.sin(angles))
    # Direct slab writes; no 2F+1-way lane concatenate.
    o_ref[:, :d] = x
    o_ref[:, d:] = trig.astype(o_ref.dtype)


def fourier_embedding(x, num_freqs: int, logscale: bool = True, scale: float = 1.0,
                      block_rows: int | None = None):
    """x: (B, D) -> (B, 2*D*num_freqs + D); same semantics as FourierEmbedding.forward."""
    assert x.ndim == 2, "expected (B, D) input"
    assert num_freqs >= 1
    B, D = x.shape
    W = 2 * num_freqs * D
    out_dim = D + W

    fs_cols, cos_mask = _freq_tables(num_freqs, logscale, scale, D)

    itemsize = jnp.dtype(x.dtype).itemsize
    if block_rows is None:
        # ~8 MiB live-tile budget: double-buffered in/out DMA tiles + f32
        # intermediates (x_rep, angles, sin, cos).  Safe under v6e's 32 MiB
        # scoped default and v7x's 64 MiB physical VMEM.
        bytes_per_row = 2 * (D + out_dim) * itemsize + 4 * W * 4
        tb = (8 * 1024 * 1024) // max(bytes_per_row, 1)
        tb = int(max(8, min(2048, (tb // 8) * 8)))
    else:
        tb = int(max(8, ((block_rows + 7) // 8) * 8))

    if tb >= B:
        tb = B          # single block: block dims equal full array dims (legal)
        bp = B
    else:
        bp = tb * pl.cdiv(B, tb)   # pad so no trailing rows are dropped

    xp = x if bp == B else jnp.pad(x, ((0, bp - B), (0, 0)))

    kernel = functools.partial(_fourier_kernel, d=D, n_rep=2 * num_freqs)

    out = pl.pallas_call(
        kernel,
        out_shape=jax.ShapeDtypeStruct((bp, out_dim), x.dtype),
        grid_spec=pltpu.PrefetchScalarGridSpec(
            num_scalar_prefetch=0,
            grid=(bp // tb,),
            in_specs=[
                pl.BlockSpec((tb, D), lambda i: (i, 0)),
                pl.BlockSpec((1, W), lambda i: (0, 0)),
                pl.BlockSpec((1, W), lambda i: (0, 0)),
            ],
            out_specs=pl.BlockSpec((tb, out_dim), lambda i: (i, 0)),
        ),
        compiler_params=pltpu.CompilerParams(
            dimension_semantics=("parallel",),
        ),
    )(xp, fs_cols, cos_mask)

    return out if bp == B else out[:B]


def fourier_embedding_ref(x, num_freqs, logscale=True, scale=1.0):
    """Pure-JAX reference mirroring the PyTorch forward exactly."""
    max_freq = num_freqs - 1
    if logscale:
        freqs = 2.0 ** jnp.linspace(0.0, float(max_freq), num_freqs)
    else:
        freqs = jnp.linspace(1.0, 2.0 ** max_freq, num_freqs)
    out = [x]
    for f in freqs:
        out.append(jnp.sin(f * x * scale))
        out.append(jnp.cos(f * x * scale))
    return jnp.concatenate(out, axis=-1)


if __name__ == "__main__":
    key = jax.random.PRNGKey(0)
    B, D = 8, 4
    num_freqs = 4
    scale = math.pi  # "pi for a normalized scene"

    x = jax.random.normal(key, (B, D), dtype=jnp.float32)

    out = fourier_embedding(x, num_freqs, logscale=True, scale=scale)
    out = jax.block_until_ready(out)
    ref = fourier_embedding_ref(x, num_freqs, logscale=True, scale=scale)
    assert out.shape == (B, 2 * D * num_freqs + D), out.shape
    assert jnp.allclose(out, ref, atol=1e-5, rtol=1e-5), "mismatch vs reference"

    # Exercise the multi-tile + padding path (non-multiple batch, tb < B).
    B2 = 20
    x2 = jax.random.normal(jax.random.PRNGKey(1), (B2, D), dtype=jnp.float32)
    out2 = jax.block_until_ready(
        fourier_embedding(x2, num_freqs, logscale=True, scale=scale, block_rows=8))
    ref2 = fourier_embedding_ref(x2, num_freqs, logscale=True, scale=scale)
    assert out2.shape == ref2.shape, (out2.shape, ref2.shape)
    assert jnp.allclose(out2, ref2, atol=1e-5, rtol=1e-5), "mismatch vs reference (tiled)"

    print("KERNEL_OK")
</pallas_src>

<mosaic_0001>
module attributes {stable_mosaic.version = 11 : i64} {
  func.func @_fourier_kernel(%arg0: i32, %arg1: memref<8x4xf32, #tpu.memory_space<vmem>>, %arg2: memref<1x32xf32, #tpu.memory_space<vmem>>, %arg3: memref<1x32xf32, #tpu.memory_space<vmem>>, %arg4: memref<8x36xf32, #tpu.memory_space<vmem>>) attributes {dimension_semantics = [#tpu.dimension_semantics<parallel>], iteration_bounds = array<i64: 1>, scalar_prefetch = 0 : i64, scratch_operands = 0 : i64, tpu.core_type = #tpu.core_type<tc>, window_params = [{transform_indices = @transform_0, window_bounds = array<i64: 8, 4>}, {pipeline_mode = #tpu.pipeline_mode<synchronous>, transform_indices = @transform_1, window_bounds = array<i64: 1, 32>}, {pipeline_mode = #tpu.pipeline_mode<synchronous>, transform_indices = @transform_2, window_bounds = array<i64: 1, 32>}, {transform_indices = @transform_3, window_bounds = array<i64: 8, 36>}]} {
    %c0 = arith.constant 0 : index
    %c0_0 = arith.constant 0 : index
    %0 = vector.load %arg1[%c0, %c0_0] : memref<8x4xf32, #tpu.memory_space<vmem>>, vector<8x4xf32>
    %1 = tpu.concatenate %0, %0, %0, %0, %0, %0, %0, %0 in 1 : vector<8x4xf32>, vector<8x4xf32>, vector<8x4xf32>, vector<8x4xf32>, vector<8x4xf32>, vector<8x4xf32>, vector<8x4xf32>, vector<8x4xf32> -> vector<8x32xf32>
    %c0_1 = arith.constant 0 : index
    %c0_2 = arith.constant 0 : index
    %2 = vector.load %arg2[%c0_1, %c0_2] : memref<1x32xf32, #tpu.memory_space<vmem>>, vector<1x32xf32>
    %3 = vector.broadcast %2 : vector<1x32xf32> to vector<8x32xf32>
    %4 = arith.mulf %1, %3 : vector<8x32xf32>
    %c0_3 = arith.constant 0 : index
    %c0_4 = arith.constant 0 : index
    %5 = vector.load %arg3[%c0_3, %c0_4] : memref<1x32xf32, #tpu.memory_space<vmem>>, vector<1x32xf32>
    %cst = arith.constant 5.000000e-01 : f32
    %6 = vector.broadcast %cst : f32 to vector<1x32xf32>
    %7 = arith.cmpf ogt, %5, %6 : vector<1x32xf32>
    %8 = math.cos %4 : vector<8x32xf32>
    %9 = math.sin %4 : vector<8x32xf32>
    %10 = vector.shape_cast %7 : vector<1x32xi1> to vector<1x32xi1>
    %11 = vector.broadcast %10 : vector<1x32xi1> to vector<8x32xi1>
    %12 = arith.select %11, %8, %9 : vector<8x32xi1>, vector<8x32xf32>
    %c0_5 = arith.constant 0 : index
    %c0_6 = arith.constant 0 : index
    %13 = vector.load %arg4[%c0_5, %c0_6] : memref<8x36xf32, #tpu.memory_space<vmem>>, vector<8x4xf32>
    tpu.vector_store %arg4[%c0_5, %c0_6], %0 {strides = array<i32>} : memref<8x36xf32, #tpu.memory_space<vmem>>, vector<8x4xf32>,
    %c0_7 = arith.constant 0 : index
    %c4 = arith.constant 4 : index
    %14 = vector.load %arg4[%c0_7, %c4] : memref<8x36xf32, #tpu.memory_space<vmem>>, vector<8x32xf32>
    tpu.vector_store %arg4[%c0_7, %c4], %12 {strides = array<i32>} : memref<8x36xf32, #tpu.memory_space<vmem>>, vector<8x32xf32>,
    return
  }
  func.func @transform_0(%arg0: i32) -> (i32, i32) {
    %c0_i32 = arith.constant 0 : i32
    %c0_i32_0 = arith.constant 0 : i32
    return %arg0, %c0_i32 : i32, i32
  }
  func.func @transform_1(%arg0: i32) -> (i32, i32) {
    %c0_i32 = arith.constant 0 : i32
    %c0_i32_0 = arith.constant 0 : i32
    %c0_i32_1 = arith.constant 0 : i32
    return %c0_i32, %c0_i32_0 : i32, i32
  }
  func.func @transform_2(%arg0: i32) -> (i32, i32) {
    %c0_i32 = arith.constant 0 : i32
    %c0_i32_0 = arith.constant 0 : i32
    %c0_i32_1 = arith.constant 0 : i32
    return %c0_i32, %c0_i32_0 : i32, i32
  }
  func.func @transform_3(%arg0: i32) -> (i32, i32) {
    %c0_i32 = arith.constant 0 : i32
    %c0_i32_0 = arith.constant 0 : i32
    return %arg0, %c0_i32 : i32, i32
  }
}

</mosaic_0001>

<llo_original>
// kernel: tpu_custom_call.1
$region0: #{tpu_custom_call.1}
  #allocation0 [shape = 'u32[]', space=smem, size = 0x4, offset = 0x4, fixed_abs, tag = 'smem constant byte address 0x4 - core index']
  #allocation1 [shape = 'u32[72,128]{1,0:T(1,128)}', space=vmem, size = 0x9000, scoped, tag = 'internal scratch']
  %s0 = inlined_call_operand.vmem [shape: f32[8,4], index: 0, kind: input, shape index: {}]
  %s1 = inlined_call_operand.vmem [shape: f32[1,32], index: 1, kind: input, shape index: {}]
  %s2 = inlined_call_operand.vmem [shape: f32[1,32], index: 2, kind: input, shape index: {}]
  %s3 = inlined_call_operand.hbm [shape: f32[8,36], index: 3, kind: output, shape index: {}]
  %s4 = sld [smem:[#allocation0]]
  $region22: #{tpu_custom_call.1} parent=0
    _
  %s6 = ssub.s32 1, %s4
  %s7 = scalar_select 0, %s6, %s4
  $region1: #{tpu_custom_call.1} parent=0
    #allocation2 [shape = 'u8[4096]{0}', space=vmem, size = 0x1000, scoped, tag = 'output window, operand 0, single buffered']
    #allocation3 [shape = 's32[1]{0}', space=sflag, size = 0x4, scoped, tag = 'scoped memory for tpu_custom_call.1']
    %8 = vsyncpa [#allocation3], 0
    // Predicated region
    $region2: #{tpu_custom_call.1} parent=1 // pred_check
      _
    $region3: #{tpu_custom_call.1} parent=1 // pred_check_branch
      %10 = sbr.rel (0) target = $region5
    $region4: #{tpu_custom_call.1} parent=1 // pred_region
      _
    $region5: #{tpu_custom_call.1} parent=1 // pred_fallthru
      _
    // Predicated region
    $region6: #{tpu_custom_call.1} parent=1 // pred_check
      _
    $region7: #{tpu_custom_call.1} parent=1 // pred_check_branch
      %12 = sbr.rel (0) target = $region9
    $region8: #{tpu_custom_call.1} parent=1 // pred_region
      _
    $region9: #{tpu_custom_call.1} parent=1 // pred_fallthru
      _
    // Predicated region
    $region10: #{tpu_custom_call.1} parent=1 // pred_check
      _
    $region11: #{tpu_custom_call.1} parent=1 // pred_check_branch
      %14 = sbr.rel (0) target = $region13
    $region12: #{tpu_custom_call.1} parent=1 // pred_region
      _
    $region13: #{tpu_custom_call.1} parent=1 // pred_fallthru
      _
    %v15 = vld [vmem:[%s0] sm:$0xff]
    %17 = vrot.lane.b32.xlu0 %v15, 4
    %v18 = vpop.permute.xlu0 %17
    %20 = vrot.lane.b32.xlu0 %v15, 8
    %v21 = vpop.permute.xlu0 %20
    %23 = vrot.lane.b32.xlu0 %v15, 12
    %v24 = vpop.permute.xlu0 %23
    %26 = vrot.lane.b32.xlu0 %v15, 16
    %v27 = vpop.permute.xlu0 %26
    %29 = vrot.lane.b32.xlu0 %v15, 20
    %v30 = vpop.permute.xlu0 %29
    %32 = vrot.lane.b32.xlu0 %v15, 24
    %v33 = vpop.permute.xlu0 %32
    %35 = vrot.lane.b32.xlu0 %v15, 28
    %v36 = vpop.permute.xlu0 %35
    %vm38 = vcmask 31744
    %v39 = vsel %vm38, %v15, %v18
    %vm40 = vcmask 64512
    %v41 = vsel %vm40, %v39, %v21
    %vm42 = vcmask 97280
    %v43 = vsel %vm42, %v41, %v24
    %vm44 = vcmask 130048
    %v45 = vsel %vm44, %v43, %v27
    %vm46 = vcmask 162816
    %v47 = vsel %vm46, %v45, %v30
    %vm48 = vcmask 195584
    %v49 = vsel %vm48, %v47, %v33
    %vm50 = vcmask 228352
    %v51 = vsel %vm50, %v49, %v36
    %v52 = vld [vmem:[%s1] sm:$0x1]
    %v54 = vperm.slane %v52, 0
    %v56 = vmul.f32 %v51, %v54
    %v57 = vld [vmem:[%s2] sm:$0x1]
    %vm58 = vcmp.gt.f32.partialorder %v57, 0.5
    %v59 = vand.u32 2147483647, %v56
    %vm60 = vcmp.le.f32.partialorder %v59, 0.7853982
    %vm61 = vcmp.lt.s32.totalorder %v56, 0
    %v62 = vand.u32 %v56, 2139095040
    %v63 = vshrl.u32 %v62, 23
    %v64 = vsub.s32 %v63, 127
    %v65 = vand.u32 2147483647, %v56
    %v66 = vand.u32 %v65, 8388607
    %v67 = vor.u32 %v66, 8388608
    %v68 = vsub.s32 0, %v67
    %v69 = vadd.s32 %v64, 1
    %vm70 = vcmp.gt.s32.totalorder %v69, 0
    %v71 = vsel %vm70, %v69, 0
    %v72 = vshrl.u32 %v71, 5
    %v73 = vand.u32 %v71, 31
    %v74 = vsub.s32 32, %v73
    %v75 = vshrl.u32 683565275, %v74
    %v76 = vshll.u32 683565275, %v73
    %v77 = vshrl.u32 2475754826, %v74
    %v78 = vor.u32 %v76, %v77
    %v79 = vshll.u32 2475754826, %v73
    %v80 = vshrl.u32 2131351028, %v74
    %v81 = vor.u32 %v79, %v80
    %v82 = vshll.u32 2131351028, %v73
    %v83 = vshrl.u32 2102212464, %v74
    %v84 = vor.u32 %v82, %v83
    %v85 = vshll.u32 2102212464, %v73
    %v86 = vshrl.u32 920167782, %v74
    %v87 = vor.u32 %v85, %v86
    %v88 = vshll.u32 920167782, %v73
    %v89 = vshrl.u32 1326507024, %v74
    %v90 = vor.u32 %v88, %v89
    %vm91 = vcmp.lt.s32.totalorder %v72, 1
    %vm92 = vcmp.lt.s32.totalorder %v72, 2
    %vm93 = vcmp.lt.s32.totalorder %v72, 3
    %vm94 = vcmp.lt.s32.totalorder %v72, 4
    %v95 = vsel %vm91, %v75, %v78
    %v96 = vsel %vm94, %v84, 2102212464
    %v97 = vsel %vm93, %v81, %v96
    %v98 = vsel %vm92, %v95, %v97
    %v99 = vsel %vm91, %v78, %v81
    %v100 = vsel %vm94, %v87, 920167782
    %v101 = vsel %vm93, %v84, %v100
    %v102 = vsel %vm92, %v99, %v101
    %v103 = vsel %vm91, %v81, %v84
    %v104 = vsel %vm94, %v90, 1326507024
    %v105 = vsel %vm93, %v87, %v104
    %v106 = vsel %vm92, %v103, %v105
    %v107 = vshll.u32 %v67, 8
    %v108 = vand.u32 %v107, 65535
    %v109 = vshrl.u32 %v107, 16
    %v110 = vand.u32 %v106, 65535
    %v111 = vshrl.u32 %v106, 16
    %v112 = vmul.u32 %v108, %v110
    %v113 = vmul.u32 %v108, %v111
    %v114 = vmul.u32 %v109, %v110
    %v115 = vmul.u32 %v109, %v111
    %v116 = vshll.u32 %v113, 16
    %v117 = vshrl.u32 %v113, 16
    %v118 = vshll.u32 %v114, 16
    %v119 = vshrl.u32 %v114, 16
    %vm120 = vc.u32 %v112, %v116
    %v121 = vsel %vm120, 1, 0
    %v122 = vadd.s32 %v112, %v116
    %v123 = vadd.s32 %v115, %v121
    %vm124 = vc.u32 %v122, %v118
    %v125 = vsel %vm124, 1, 0
    %v126 = vadd.s32 %v122, %v118
    %v127 = vadd.s32 %v123, %v125
    %v128 = vadd.s32 %v127, %v117
    %v129 = vadd.s32 %v128, %v119
    %v130 = vand.u32 %v107, 65535
    %v131 = vshrl.u32 %v107, 16
    %v132 = vand.u32 %v102, 65535
    %v133 = vshrl.u32 %v102, 16
    %v134 = vmul.u32 %v130, %v132
    %v135 = vmul.u32 %v130, %v133
    %v136 = vmul.u32 %v131, %v132
    %v137 = vmul.u32 %v131, %v133
    %v138 = vshll.u32 %v135, 16
    %v139 = vshrl.u32 %v135, 16
    %v140 = vshll.u32 %v136, 16
    %v141 = vshrl.u32 %v136, 16
    %vm142 = vc.u32 %v134, %v138
    %v143 = vsel %vm142, 1, 0
    %v144 = vadd.s32 %v134, %v138
    %v145 = vadd.s32 %v137, %v143
    %vm146 = vc.u32 %v144, %v140
    %v147 = vsel %vm146, 1, 0
    %v148 = vadd.s32 %v144, %v140
    %v149 = vadd.s32 %v145, %v147
    %v150 = vadd.s32 %v149, %v139
    %v151 = vadd.s32 %v150, %v141
    %v152 = vmul.u32 %v107, %v98
    %v153 = vadd.s32 %v129, %v148
    %vm154 = vc.u32 %v129, %v148
    %v155 = vadd.s32 %v151, 1
    %v156 = vsel %vm154, %v155, %v151
    %v157 = vadd.s32 %v152, %v156
    %v158 = vadd.s32 %v157, 536870912
    %v159 = vshrl.u32 %v158, 30
    %v160 = vshll.u32 %v159, 30
    %v161 = vsub.s32 %v157, %v160
    %vm162 = vcmp.lt.s32.totalorder %v161, 0
    %v163 = vsub.s32 0, %v161
    %v164 = vsel %vm162, %v163, %v161
    %v165 = vclz %v164
    %v166 = vsub.s32 %v165, 2
    %vm167 = vcmp.gt.s32.totalorder 0, %v166
    %v168 = vsel %vm167, 0, %v166
    %v169 = vsub.s32 32, %v168
    %v170 = vshll.u32 %v161, %v168
    %v171 = vshrl.u32 %v153, %v169
    %v172 = vor.u32 %v170, %v171
    %v173 = vsub.s32 4294967266, %v168
    %v174 = vadd.s32 %v173, 127
    %v175 = vshll.u32 %v174, 23
    %v176 = vor.u32 4788187, %v175
    %v177 = vand.u32 2147483647, %v176
    %v179 = vcvt.s32.f32 %v172
    %v180 = vmul.f32 %v179, %v177
    %v181 = vxor.u32 %v180, 2147483648
    %v182 = vsel %vm61, %v181, %v180
    %v183 = vsub.s32 4, %v159
    %v184 = vsel %vm61, %v183, %v159
    %v185 = vsel %vm60, %v56, %v182
    %v186 = vsel %vm60, 0, %v184
    %v187 = vmul.f32 %v185, %v185
    %v188 = vmul.f32 %v187, -0.001358992
    %v189 = vadd.f32 %v188, 0.041655596
    %v190 = vmul.f32 %v187, %v189
    %v191 = vadd.f32 %v190, -0.4999988
    %v192 = vmul.f32 %v187, %v191
    %v193 = vadd.f32 1.0, %v192
    %v194 = vmul.f32 %v185, %v185
    %v195 = vmul.f32 %v194, -0.00019511016
    %v196 = vadd.f32 %v195, 0.008332121
    %v197 = vmul.f32 %v194, %v196
    %v198 = vadd.f32 %v197, -0.16666654
    %v199 = vmul.f32 %v194, %v198
    %v200 = vadd.f32 %v199, 1.0
    %v201 = vmul.f32 %v200, %v185
    %vm202 = vweird.f32 %v56
    %v203 = vand.u32 %v186, 3
    %vm204 = vcmp.lt.s32.totalorder %v203, 2
    %vm205 = vcmp.eq.s32.totalorder %v203, 0
    %v206 = vxor.u32 %v201, 2147483648
    %v207 = vsel %vm205, %v193, %v206
    %vm208 = vcmp.eq.s32.totalorder %v203, 2
    %v209 = vxor.u32 %v193, 2147483648
    %v210 = vsel %vm208, %v209, %v201
    %v211 = vsel %vm204, %v207, %v210
    %v212 = vsel %vm202, nan, %v211
    %v213 = vand.u32 2147483647, %v56
    %vm214 = vcmp.le.f32.partialorder %v213, 0.7853982
    %vm215 = vcmp.lt.s32.totalorder %v56, 0
    %v216 = vand.u32 %v56, 2139095040
    %v217 = vshrl.u32 %v216, 23
    %v218 = vsub.s32 %v217, 127
    %v219 = vand.u32 2147483647, %v56
    %v220 = vand.u32 %v219, 8388607
    %v221 = vor.u32 %v220, 8388608
    %v222 = vsub.s32 0, %v221
    %v223 = vadd.s32 %v218, 1
    %vm224 = vcmp.gt.s32.totalorder %v223, 0
    %v225 = vsel %vm224, %v223, 0
    %v226 = vshrl.u32 %v225, 5
    %v227 = vand.u32 %v225, 31
    %v228 = vsub.s32 32, %v227
    %v229 = vshrl.u32 683565275, %v228
    %v230 = vshll.u32 683565275, %v227
    %v231 = vshrl.u32 2475754826, %v228
    %v232 = vor.u32 %v230, %v231
    %v233 = vshll.u32 2475754826, %v227
    %v234 = vshrl.u32 2131351028, %v228
    %v235 = vor.u32 %v233, %v234
    %v236 = vshll.u32 2131351028, %v227
    %v237 = vshrl.u32 2102212464, %v228
    %v238 = vor.u32 %v236, %v237
    %v239 = vshll.u32 2102212464, %v227
    %v240 = vshrl.u32 920167782, %v228
    %v241 = vor.u32 %v239, %v240
    %v242 = vshll.u32 920167782, %v227
    %v243 = vshrl.u32 1326507024, %v228
    %v244 = vor.u32 %v242, %v243
    %vm245 = vcmp.lt.s32.totalorder %v226, 1
    %vm246 = vcmp.lt.s32.totalorder %v226, 2
    %vm247 = vcmp.lt.s32.totalorder %v226, 3
    %vm248 = vcmp.lt.s32.totalorder %v226, 4
    %v249 = vsel %vm245, %v229, %v232
    %v250 = vsel %vm248, %v238, 2102212464
    %v251 = vsel %vm247, %v235, %v250
    %v252 = vsel %vm246, %v249, %v251
    %v253 = vsel %vm245, %v232, %v235
    %v254 = vsel %vm248, %v241, 920167782
    %v255 = vsel %vm247, %v238, %v254
    %v256 = vsel %vm246, %v253, %v255
    %v257 = vsel %vm245, %v235, %v238
    %v258 = vsel %vm248, %v244, 1326507024
    %v259 = vsel %vm247, %v241, %v258
    %v260 = vsel %vm246, %v257, %v259
    %v261 = vshll.u32 %v221, 8
    %v262 = vand.u32 %v261, 65535
    %v263 = vshrl.u32 %v261, 16
    %v264 = vand.u32 %v260, 65535
    %v265 = vshrl.u32 %v260, 16
    %v266 = vmul.u32 %v262, %v264
    %v267 = vmul.u32 %v262, %v265
    %v268 = vmul.u32 %v263, %v264
    %v269 = vmul.u32 %v263, %v265
    %v270 = vshll.u32 %v267, 16
    %v271 = vshrl.u32 %v267, 16
    %v272 = vshll.u32 %v268, 16
    %v273 = vshrl.u32 %v268, 16
    %vm274 = vc.u32 %v266, %v270
    %v275 = vsel %vm274, 1, 0
    %v276 = vadd.s32 %v266, %v270
    %v277 = vadd.s32 %v269, %v275
    %vm278 = vc.u32 %v276, %v272
    %v279 = vsel %vm278, 1, 0
    %v280 = vadd.s32 %v276, %v272
    %v281 = vadd.s32 %v277, %v279
    %v282 = vadd.s32 %v281, %v271
    %v283 = vadd.s32 %v282, %v273
    %v284 = vand.u32 %v261, 65535
    %v285 = vshrl.u32 %v261, 16
    %v286 = vand.u32 %v256, 65535
    %v287 = vshrl.u32 %v256, 16
    %v288 = vmul.u32 %v284, %v286
    %v289 = vmul.u32 %v284, %v287
    %v290 = vmul.u32 %v285, %v286
    %v291 = vmul.u32 %v285, %v287
    %v292 = vshll.u32 %v289, 16
    %v293 = vshrl.u32 %v289, 16
    %v294 = vshll.u32 %v290, 16
    %v295 = vshrl.u32 %v290, 16
    %vm296 = vc.u32 %v288, %v292
    %v297 = vsel %vm296, 1, 0
    %v298 = vadd.s32 %v288, %v292
    %v299 = vadd.s32 %v291, %v297
    %vm300 = vc.u32 %v298, %v294
    %v301 = vsel %vm300, 1, 0
    %v302 = vadd.s32 %v298, %v294
    %v303 = vadd.s32 %v299, %v301
    %v304 = vadd.s32 %v303, %v293
    %v305 = vadd.s32 %v304, %v295
    %v306 = vmul.u32 %v261, %v252
    %v307 = vadd.s32 %v283, %v302
    %vm308 = vc.u32 %v283, %v302
    %v309 = vadd.s32 %v305, 1
    %v310 = vsel %vm308, %v309, %v305
    %v311 = vadd.s32 %v306, %v310
    %v312 = vadd.s32 %v311, 536870912
    %v313 = vshrl.u32 %v312, 30
    %v314 = vshll.u32 %v313, 30
    %v315 = vsub.s32 %v311, %v314
    %vm316 = vcmp.lt.s32.totalorder %v315, 0
    %v317 = vsub.s32 0, %v315
    %v318 = vsel %vm316, %v317, %v315
    %v319 = vclz %v318
    %v320 = vsub.s32 %v319, 2
    %vm321 = vcmp.gt.s32.totalorder 0, %v320
    %v322 = vsel %vm321, 0, %v320
    %v323 = vsub.s32 32, %v322
    %v324 = vshll.u32 %v315, %v322
    %v325 = vshrl.u32 %v307, %v323
    %v326 = vor.u32 %v324, %v325
    %v327 = vsub.s32 4294967266, %v322
    %v328 = vadd.s32 %v327, 127
    %v329 = vshll.u32 %v328, 23
    %v330 = vor.u32 4788187, %v329
    %v331 = vand.u32 2147483647, %v330
    %v333 = vcvt.s32.f32 %v326
    %v334 = vmul.f32 %v333, %v331
    %v335 = vxor.u32 %v334, 2147483648
    %v336 = vsel %vm215, %v335, %v334
    %v337 = vsub.s32 4, %v313
    %v338 = vsel %vm215, %v337, %v313
    %v339 = vsel %vm214, %v56, %v336
    %v340 = vsel %vm214, 0, %v338
    %v341 = vmul.f32 %v339, %v339
    %v342 = vmul.f32 %v341, -0.001358992
    %v343 = vadd.f32 %v342, 0.041655596
    %v344 = vmul.f32 %v341, %v343
    %v345 = vadd.f32 %v344, -0.4999988
    %v346 = vmul.f32 %v341, %v345
    %v347 = vadd.f32 1.0, %v346
    %v348 = vmul.f32 %v339, %v339
    %v349 = vmul.f32 %v348, -0.00019511016
    %v350 = vadd.f32 %v349, 0.008332121
    %v351 = vmul.f32 %v348, %v350
    %v352 = vadd.f32 %v351, -0.16666654
    %v353 = vmul.f32 %v348, %v352
    %v354 = vadd.f32 %v353, 1.0
    %v355 = vmul.f32 %v354, %v339
    %vm356 = vweird.f32 %v56
    %v357 = vadd.s32 %v340, 3
    %v358 = vand.u32 %v357, 3
    %vm359 = vcmp.lt.s32.totalorder %v358, 2
    %vm360 = vcmp.eq.s32.totalorder %v358, 0
    %v361 = vxor.u32 %v355, 2147483648
    %v362 = vsel %vm360, %v347, %v361
    %vm363 = vcmp.eq.s32.totalorder %v358, 2
    %v364 = vxor.u32 %v347, 2147483648
    %v365 = vsel %vm363, %v364, %v355
    %v366 = vsel %vm359, %v362, %v365
    %v367 = vsel %vm356, nan, %v366
    %v368 = vsel %vm58, 1, 0
    %v369 = vperm.slane %v368, 0
    %vm370 = vcmp.eq.s32.totalorder %v369, 1
    %v371 = vsel %vm370, %v212, %v367
    %372 = vst.msk [vmem:[#allocation2] sm:$0xff] %vm38, %v15
    %374 = vrot.lane.b32.xlu0 %v371, 4
    %v375 = vpop.permute.xlu0 %374
    %vm377 = vcmask 293920
    %378 = vst.msk [vmem:[#allocation2] sm:$0xff] %vm377, %v375
    // Predicated region
    $region14: #{tpu_custom_call.1} parent=1 // pred_check
      _
    $region15: #{tpu_custom_call.1} parent=1 // pred_check_branch
      %380 = sbr.rel (0) target = $region17
    $region16: #{tpu_custom_call.1} parent=1 // pred_region
      %382 = vsyncadd [#allocation3], 0
      %s384 = sshll.u32 [#allocation2], 4
      %s385 = int_to_ptr.vmem [resolvable:$true] %s384
      %s386 = sshll.u32 %s3, 4
      %s387 = int_to_ptr.hbm [resolvable:$true] %s386
      %389 = dma.vmem_to_hbm [thread:$0]  %s385, 128, %s387, [#allocation3]
    $region17: #{tpu_custom_call.1} parent=1 // pred_fallthru
      _
    // Predicated region
    $region18: #{tpu_custom_call.1} parent=1 // pred_check
      _
    $region19: #{tpu_custom_call.1} parent=1 // pred_check_branch
      %391 = sbr.rel (0) target = $region21
    $region20: #{tpu_custom_call.1} parent=1 // pred_region
      %393 = dma.done [#allocation3], 128
    $region21: #{tpu_custom_call.1} parent=1 // pred_fallthru
      _
    %394 = vsyncpa [#allocation3], 1

</llo_original>
